<compile_context>
chip_gen: v7x
topology: tpu7x:2x2x1
jax: 0.10.0
libtpu: 0.0.40
codegen_flags: <defaults>
</compile_context>

<pallas_src>
import functools

import jax
import jax.numpy as jnp
from jax.experimental import pallas as pl
from jax.experimental.pallas import tpu as pltpu


_BN_EPS = 1e-5
_IMAGENET_MEAN = (0.485, 0.456, 0.406)   # size==34 branch of MCR.__init__
_IMAGENET_STD = (0.229, 0.224, 0.225)


# ------------------------------ small helpers -------------------------------

def _pick_tile(dim, candidates):
    """Largest candidate that divides `dim`; fall back to the full dim."""
    for c in candidates:
        if c <= dim and dim % c == 0:
            return c
    return dim


def _largest_divisor_leq(n, cap):
    cap = max(1, min(cap, n))
    for d in range(cap, 0, -1):
        if n % d == 0:
            return d
    return 1


def _s1_taps(kh, kw):
    return [(i, j) for i in range(kh) for j in range(kw)]


def _s2_taps(kh, kw, hq):
    # Stride-2 folded into 4 phase planes stacked along H: plane p = 2*(i%2)+(j%2).
    return [(((i % 2) * 2 + (j % 2)) * hq + i // 2, j // 2)
            for i in range(kh) for j in range(kw)]


def _phase_planes_s2(xp, pad_value=0.0):
    """(N, Hp, Wp, C) -> (N, 4*Hq, Wq, C) stride-2 phase planes (one ~1x copy)."""
    N, Hp, Wp, C = xp.shape
    if Hp % 2:
        xp = jnp.pad(xp, ((0, 0), (0, 1), (0, 0), (0, 0)),
                     constant_values=pad_value)
        Hp += 1
    if Wp % 2:
        xp = jnp.pad(xp, ((0, 0), (0, 0), (0, 1), (0, 0)),
                     constant_values=pad_value)
        Wp += 1
    Hq, Wq = Hp // 2, Wp // 2
    planes = [xp[:, a::2, b::2, :] for a in (0, 1) for b in (0, 1)]
    return jnp.concatenate(planes, axis=1), Hq


# ------------------------------ Pallas kernels ------------------------------

def _preprocess_kernel(x_ref, s_ref, b_ref, o_ref):
    # uint8 in -> f32 fused (x * scale + bias) -> bf16 out.
    x = x_ref[...].astype(jnp.int32).astype(jnp.float32)
    o_ref[...] = (x * s_ref[...] + b_ref[...]).astype(o_ref.dtype)


def _conv_bn_stats_kernel(x_ref, w_ref, o_ref, s_ref, q_ref, *, taps, th, wo):
    # x_ref: (nb, rows, Wq, Cin) bf16 padded/phase-folded input (resident per image)
    # w_ref: (n_taps, Cin, Cout) bf16 (resident across the whole grid)
    # o_ref: (nb, th, wo, Cout) bf16 output tile for this grid step
    # s_ref, q_ref: (1, 1, 1, Cout) f32 per-step partial sum / sum-of-squares
    nb, _, _, cout = o_ref.shape
    cin = x_ref.shape[3]
    row0 = pl.program_id(1) * th
    acc = jnp.zeros((nb * th * wo, cout), jnp.float32)
    for k, (di, dj) in enumerate(taps):
        win = x_ref[:, pl.ds(di + row0, th), pl.ds(dj, wo), :]
        acc = acc + jnp.dot(win.reshape(nb * th * wo, cin), w_ref[k],
                            preferred_element_type=jnp.float32)
    o_ref[...] = acc.reshape(nb, th, wo, cout).astype(o_ref.dtype)
    s_ref[...] = jnp.sum(acc, axis=0).reshape(1, 1, 1, cout)
    q_ref[...] = jnp.sum(acc * acc, axis=0).reshape(1, 1, 1, cout)


def _bn_apply_kernel(x_ref, s_ref, b_ref, *rest, relu, res_mode):
    # y = x*scale + shift [+ residual | + residual*res_scale + res_shift] [ReLU]
    if res_mode == "affine":
        r_ref, rs_ref, rb_ref, o_ref = rest
    elif res_mode == "add":
        r_ref, o_ref = rest
    else:
        (o_ref,) = rest
    y = x_ref[...].astype(jnp.float32) * s_ref[...] + b_ref[...]
    if res_mode == "affine":
        y = y + r_ref[...].astype(jnp.float32) * rs_ref[...] + rb_ref[...]
    elif res_mode == "add":
        y = y + r_ref[...].astype(jnp.float32)
    if relu:
        y = jnp.maximum(y, 0.0)
    o_ref[...] = y.astype(o_ref.dtype)


def _maxpool_kernel(x_ref, o_ref, *, taps, ho, wo):
    r = None
    for (di, dj) in taps:
        win = x_ref[0, pl.ds(di, ho), pl.ds(dj, wo), :]
        r = win if r is None else jnp.maximum(r, win)
    o_ref[0] = r


def _gap_kernel(x_ref, o_ref):
    o_ref[...] = jnp.mean(x_ref[0].astype(jnp.float32), axis=0, keepdims=True)


# ------------------------------ Pallas wrappers ------------------------------

def preprocess(obs_nchw):
    """obs.float()/255 then Normalize(mean, std); uint8 in, bf16 NHWC out."""
    N, C, H, W = obs_nchw.shape
    x = obs_nchw.reshape(N * C, H * W)                        # raw uint8
    mean = jnp.asarray(_IMAGENET_MEAN, jnp.float32)
    istd = 1.0 / jnp.asarray(_IMAGENET_STD, jnp.float32)
    scale = jnp.tile(istd / 255.0, (N,)).reshape(N * C, 1)
    bias = jnp.tile(-mean * istd, (N,)).reshape(N * C, 1)
    tc = _pick_tile(H * W, (4096, 2048, 1024, 512, 256, 128))
    out = pl.pallas_call(
        _preprocess_kernel,
        out_shape=jax.ShapeDtypeStruct((N * C, H * W), jnp.bfloat16),
        grid=(H * W // tc,),
        in_specs=[pl.BlockSpec((N * C, tc), lambda i: (0, i)),
                  pl.BlockSpec((N * C, 1), lambda i: (0, 0)),
                  pl.BlockSpec((N * C, 1), lambda i: (0, 0))],
        out_specs=pl.BlockSpec((N * C, tc), lambda i: (0, i)),
        compiler_params=pltpu.CompilerParams(
            dimension_semantics=("parallel",)),
    )(x, scale, bias)
    return jnp.transpose(out.reshape(N, C, H, W), (0, 2, 3, 1))   # NHWC bf16


def conv_bn(src, w_taps, taps, Ho, Wo, *, row_block=None):
    """Bias-free conv with fused BN statistics.

    src:    (N, R, Wq, Cin) bf16 padded (or stride-2 phase-folded) activation.
    w_taps: (n_taps, Cin, Cout) bf16.
    Returns (y bf16 (N, Ho, Wo, Cout), mean (Cout,) f32, biased var (Cout,) f32).
    """
    N, R, Wq, Cin = src.shape
    Cout = w_taps.shape[-1]
    # ~128 KiB f32 accumulator per grid step.
    target_rows = max(64, min(512, (128 * 1024) // (4 * Cout)))
    if Ho * Wo <= target_rows // 2 and N > 1:
        nb = _largest_divisor_leq(N, max(1, target_rows // (Ho * Wo)))
        th = Ho
    else:
        nb = 1
        th = _largest_divisor_leq(Ho, max(1, target_rows // Wo))
    g0, g1 = N // nb, Ho // th
    if row_block is None:
        row_idx, row_len = 0, R
    else:
        row_idx, row_len = row_block           # e.g. phase-plane 3 for 1x1 s2

    kernel = functools.partial(_conv_bn_stats_kernel, taps=taps, th=th, wo=Wo)
    y, s, q = pl.pallas_call(
        kernel,
        out_shape=(jax.ShapeDtypeStruct((N, Ho, Wo, Cout), jnp.bfloat16),
                   jax.ShapeDtypeStruct((g0, g1, 1, Cout), jnp.float32),
                   jax.ShapeDtypeStruct((g0, g1, 1, Cout), jnp.float32)),
        grid=(g0, g1),
        in_specs=[pl.BlockSpec((nb, row_len, Wq, Cin),
                               lambda n, t: (n, row_idx, 0, 0)),
                  pl.BlockSpec(w_taps.shape, lambda n, t: (0, 0, 0))],
        out_specs=(pl.BlockSpec((nb, th, Wo, Cout), lambda n, t: (n, t, 0, 0)),
                   pl.BlockSpec((1, 1, 1, Cout), lambda n, t: (n, t, 0, 0)),
                   pl.BlockSpec((1, 1, 1, Cout), lambda n, t: (n, t, 0, 0))),
        compiler_params=pltpu.CompilerParams(
            dimension_semantics=("parallel", "parallel")),
    )(src, w_taps)

    cnt = float(N * Ho * Wo)
    mean = jnp.sum(s, axis=(0, 1, 2)) / cnt
    var = jnp.maximum(jnp.sum(q, axis=(0, 1, 2)) / cnt - mean * mean, 0.0)
    return y, mean, var


def bn_apply(x_pc, mean, var, gamma, beta, *, relu, residual=None,
             res_affine=None, out_dtype=jnp.bfloat16):
    """Fused BN affine (+residual / +downsample-affine) (+ReLU): bf16 in/out."""
    P, C = x_pc.shape
    scale = gamma.astype(jnp.float32) * jax.lax.rsqrt(var + _BN_EPS)
    shift = beta.astype(jnp.float32) - mean * scale
    tp = _pick_tile(P, (1024, 512, 256, 128, 64, 32, 16, 8))
    n_tiles = P // tp
    if residual is None:
        res_mode = "none"
    elif res_affine is None:
        res_mode = "add"
    else:
        res_mode = "affine"

    kernel = functools.partial(_bn_apply_kernel, relu=relu, res_mode=res_mode)
    inputs = [x_pc, scale.reshape(1, C), shift.reshape(1, C)]
    in_specs = [pl.BlockSpec((tp, C), lambda i: (i, 0)),
                pl.BlockSpec((1, C), lambda i: (0, 0)),
                pl.BlockSpec((1, C), lambda i: (0, 0))]
    if res_mode != "none":
        inputs.append(residual)
        in_specs.append(pl.BlockSpec((tp, C), lambda i: (i, 0)))
    if res_mode == "affine":
        rs, rb = res_affine
        inputs += [rs.reshape(1, C), rb.reshape(1, C)]
        in_specs += [pl.BlockSpec((1, C), lambda i: (0, 0)),
                     pl.BlockSpec((1, C), lambda i: (0, 0))]
    return pl.pallas_call(
        kernel,
        out_shape=jax.ShapeDtypeStruct((P, C), out_dtype),
        grid=(n_tiles,),
        in_specs=in_specs,
        out_specs=pl.BlockSpec((tp, C), lambda i: (i, 0)),
        compiler_params=pltpu.CompilerParams(
            dimension_semantics=("parallel",)),
    )(*inputs)


def maxpool_3x3_s2_p1(x_nhwc):
    N, H, W, C = x_nhwc.shape
    Ho, Wo = (H - 1) // 2 + 1, (W - 1) // 2 + 1
    xp = jnp.pad(x_nhwc, ((0, 0), (1, 1), (1, 1), (0, 0)),
                 constant_values=-jnp.inf)
    src, Hq = _phase_planes_s2(xp, pad_value=-jnp.inf)
    taps = _s2_taps(3, 3, Hq)
    kernel = functools.partial(_maxpool_kernel, taps=taps, ho=Ho, wo=Wo)
    blk = (1,) + src.shape[1:]
    return pl.pallas_call(
        kernel,
        out_shape=jax.ShapeDtypeStruct((N, Ho, Wo, C), x_nhwc.dtype),
        grid=(N,),
        in_specs=[pl.BlockSpec(blk, lambda n: (n, 0, 0, 0))],
        out_specs=pl.BlockSpec((1, Ho, Wo, C), lambda n: (n, 0, 0, 0)),
        compiler_params=pltpu.CompilerParams(
            dimension_semantics=("parallel",)),
    )(src)


def global_avgpool(x_nhwc):
    N, H, W, C = x_nhwc.shape
    x = x_nhwc.reshape(N, H * W, C)
    return pl.pallas_call(
        _gap_kernel,
        out_shape=jax.ShapeDtypeStruct((N, C), jnp.float32),
        grid=(N,),
        in_specs=[pl.BlockSpec((1, H * W, C), lambda n: (n, 0, 0))],
        out_specs=pl.BlockSpec((1, C), lambda n: (n, 0)),
        compiler_params=pltpu.CompilerParams(
            dimension_semantics=("parallel",)),
    )(x)


# --------------------------- ResNet-34 (size == 34) -------------------------

_STAGES = ((3, 64), (4, 128), (6, 256), (3, 512))      # torchvision resnet34


def init_params(key):
    """Synthetic weights matching ResNet-34 shapes (bias-free convs as bf16
    HWIO, BN gamma=1 / beta=0 in f32, fc=Identity)."""
    counter = [0]

    def nxt():
        counter[0] += 1
        return jax.random.fold_in(key, counter[0])

    def conv_w(kh, kw, cin, cout):
        scale = (2.0 / (kh * kw * cin)) ** 0.5
        w = jax.random.normal(nxt(), (kh, kw, cin, cout), jnp.float32) * scale
        return w.astype(jnp.bfloat16)

    params = {
        "conv1_w": conv_w(7, 7, 3, 64),
        "bn1_g": jnp.ones((64,), jnp.float32),
        "bn1_b": jnp.zeros((64,), jnp.float32),
        "blocks": [],
    }
    in_c = 64
    for stage_idx, (n_blocks, out_c) in enumerate(_STAGES):
        for blk in range(n_blocks):
            stride = 2 if (blk == 0 and stage_idx > 0) else 1
            bp = {
                "stride": stride,
                "conv1_w": conv_w(3, 3, in_c, out_c),
                "bn1_g": jnp.ones((out_c,), jnp.float32),
                "bn1_b": jnp.zeros((out_c,), jnp.float32),
                "conv2_w": conv_w(3, 3, out_c, out_c),
                "bn2_g": jnp.ones((out_c,), jnp.float32),
                "bn2_b": jnp.zeros((out_c,), jnp.float32),
            }
            if stride != 1 or in_c != out_c:
                bp["down_w"] = conv_w(1, 1, in_c, out_c)
                bp["down_g"] = jnp.ones((out_c,), jnp.float32)
                bp["down_b"] = jnp.zeros((out_c,), jnp.float32)
            params["blocks"].append(bp)
            in_c = out_c
    return params


def stem(x_nhwc, params):
    """conv7x7/s2/p3 -> BN -> ReLU -> maxpool3x3/s2/p1."""
    N, H, W, _ = x_nhwc.shape
    xp = jnp.pad(x_nhwc, ((0, 0), (3, 3), (3, 3), (0, 0)))
    src, Hq = _phase_planes_s2(xp)
    taps = _s2_taps(7, 7, Hq)
    Ho, Wo = (H + 6 - 7) // 2 + 1, (W + 6 - 7) // 2 + 1
    w = params["conv1_w"].reshape(49, 3, 64)
    y, m, v = conv_bn(src, w, taps, Ho, Wo)
    a = bn_apply(y.reshape(N * Ho * Wo, 64), m, v,
                 params["bn1_g"], params["bn1_b"], relu=True)
    return maxpool_3x3_s2_p1(a.reshape(N, Ho, Wo, 64))


def basic_block(x_nhwc, bp):
    N, H, W, Cin = x_nhwc.shape
    stride = bp["stride"]
    Cout = bp["conv1_w"].shape[-1]

    if stride == 1:
        src1 = jnp.pad(x_nhwc, ((0, 0), (1, 1), (1, 1), (0, 0)))
        taps1 = _s1_taps(3, 3)
        Ho, Wo = H, W
        Hq = None
    else:
        xp = jnp.pad(x_nhwc, ((0, 0), (1, 1), (1, 1), (0, 0)))
        src1, Hq = _phase_planes_s2(xp)
        taps1 = _s2_taps(3, 3, Hq)
        Ho, Wo = (H - 1) // 2 + 1, (W - 1) // 2 + 1

    # conv1 -> BN1 -> ReLU
    w1 = bp["conv1_w"].reshape(9, Cin, Cout)
    y1, m1, v1 = conv_bn(src1, w1, taps1, Ho, Wo)
    a1 = bn_apply(y1.reshape(N * Ho * Wo, Cout), m1, v1,
                  bp["bn1_g"], bp["bn1_b"], relu=True)

    # conv2 -> BN2 (+ residual) -> ReLU
    src2 = jnp.pad(a1.reshape(N, Ho, Wo, Cout), ((0, 0), (1, 1), (1, 1), (0, 0)))
    w2 = bp["conv2_w"].reshape(9, Cout, Cout)
    y2, m2, v2 = conv_bn(src2, w2, _s1_taps(3, 3), Ho, Wo)

    if "down_w" in bp:
        # 1x1 stride-2 downsample: reads phase-plane 3 of src1 (no XLA
        # strided-subsample copy); its BN is folded into the final apply as an
        # affine on the residual, so `d` is never normalized/stored separately.
        wd = bp["down_w"].reshape(1, Cin, Cout)
        d, md, vd = conv_bn(src1, wd, [(0, 0)], Ho, Wo, row_block=(3, Hq))
        sd = bp["down_g"].astype(jnp.float32) * jax.lax.rsqrt(vd + _BN_EPS)
        bd = bp["down_b"].astype(jnp.float32) - md * sd
        out = bn_apply(y2.reshape(N * Ho * Wo, Cout), m2, v2,
                       bp["bn2_g"], bp["bn2_b"], relu=True,
                       residual=d.reshape(N * Ho * Wo, Cout),
                       res_affine=(sd, bd))
    else:
        out = bn_apply(y2.reshape(N * Ho * Wo, Cout), m2, v2,
                       bp["bn2_g"], bp["bn2_b"], relu=True,
                       residual=x_nhwc.reshape(N * H * W, Cin))
    return out.reshape(N, Ho, Wo, Cout)


def mcr_forward(obs_nchw, params):
    """MCR.forward: obs -> /255 -> Normalize -> ResNet-34 (fc=Identity) -> h."""
    # TODO(synk): the obs_shape != [3,224,224] branch (Resize(256)+CenterCrop(224),
    # bilinear interpolation) has no clean Pallas equivalent; only the default
    # Normalize-only branch (the module's default arguments) is implemented.
    x = preprocess(obs_nchw)                     # (N, H, W, 3) bf16
    x = stem(x, params)                          # (N, H/4, W/4, 64) bf16
    for bp in params["blocks"]:
        x = basic_block(x, bp)
    return global_avgpool(x)                     # (N, 512) f32 == self.outdim


# ----------------------------------- main -----------------------------------

if __name__ == "__main__":
    key = jax.random.PRNGKey(0)
    pkey, okey = jax.random.split(key)
    params = init_params(pkey)
    # obs: NCHW uint8-valued image batch (small spatial size for the demo).
    obs = jax.random.randint(okey, (2, 3, 64, 64), 0, 256,
                             dtype=jnp.int32).astype(jnp.uint8)
    h = mcr_forward(obs, params)
    h = jax.block_until_ready(h)
    assert h.shape == (2, 512) and h.dtype == jnp.float32
    assert bool(jnp.all(jnp.isfinite(h)))
    print("KERNEL_OK")
</pallas_src>

<mosaic_0001>
module attributes {stable_mosaic.version = 11 : i64} {
  func.func @_preprocess_kernel(%arg0: i32, %arg1: memref<6x4096xi8, #tpu.memory_space<vmem>>, %arg2: memref<6x1xf32, #tpu.memory_space<vmem>>, %arg3: memref<6x1xf32, #tpu.memory_space<vmem>>, %arg4: memref<6x4096xbf16, #tpu.memory_space<vmem>>) attributes {dimension_semantics = [#tpu.dimension_semantics<parallel>], iteration_bounds = array<i64: 1>, scalar_prefetch = 0 : i64, scratch_operands = 0 : i64, tpu.core_type = #tpu.core_type<tc>, window_params = [{transform_indices = @transform_0, window_bounds = array<i64: 6, 4096>}, {pipeline_mode = #tpu.pipeline_mode<synchronous>, transform_indices = @transform_1, window_bounds = array<i64: 6, 1>}, {pipeline_mode = #tpu.pipeline_mode<synchronous>, transform_indices = @transform_2, window_bounds = array<i64: 6, 1>}, {transform_indices = @transform_3, window_bounds = array<i64: 6, 4096>}]} {
    %c0 = arith.constant 0 : index
    %c0_0 = arith.constant 0 : index
    %0 = vector.load %arg1[%c0, %c0_0] : memref<6x4096xi8, #tpu.memory_space<vmem>>, vector<6x4096xi8>
    %1 = arith.extui %0 : vector<6x4096xi8> to vector<6x4096xi32>
    %2 = arith.sitofp %1 : vector<6x4096xi32> to vector<6x4096xf32>
    %c0_1 = arith.constant 0 : index
    %c0_2 = arith.constant 0 : index
    %3 = vector.load %arg2[%c0_1, %c0_2] : memref<6x1xf32, #tpu.memory_space<vmem>>, vector<6x1xf32>
    %4 = vector.broadcast %3 : vector<6x1xf32> to vector<6x4096xf32>
    %5 = arith.mulf %2, %4 : vector<6x4096xf32>
    %c0_3 = arith.constant 0 : index
    %c0_4 = arith.constant 0 : index
    %6 = vector.load %arg3[%c0_3, %c0_4] : memref<6x1xf32, #tpu.memory_space<vmem>>, vector<6x1xf32>
    %7 = vector.broadcast %6 : vector<6x1xf32> to vector<6x4096xf32>
    %8 = arith.addf %5, %7 : vector<6x4096xf32>
    %9 = arith.truncf %8 : vector<6x4096xf32> to vector<6x4096xbf16>
    %c0_5 = arith.constant 0 : index
    %c0_6 = arith.constant 0 : index
    %10 = vector.load %arg4[%c0_5, %c0_6] : memref<6x4096xbf16, #tpu.memory_space<vmem>>, vector<6x4096xbf16>
    tpu.vector_store %arg4[%c0_5, %c0_6], %9 {strides = array<i32>} : memref<6x4096xbf16, #tpu.memory_space<vmem>>, vector<6x4096xbf16>,
    return
  }
  func.func @transform_0(%arg0: i32) -> (i32, i32) {
    %c0_i32 = arith.constant 0 : i32
    %c0_i32_0 = arith.constant 0 : i32
    return %c0_i32, %arg0 : i32, i32
  }
  func.func @transform_1(%arg0: i32) -> (i32, i32) {
    %c0_i32 = arith.constant 0 : i32
    %c0_i32_0 = arith.constant 0 : i32
    %c0_i32_1 = arith.constant 0 : i32
    return %c0_i32, %c0_i32_0 : i32, i32
  }
  func.func @transform_2(%arg0: i32) -> (i32, i32) {
    %c0_i32 = arith.constant 0 : i32
    %c0_i32_0 = arith.constant 0 : i32
    %c0_i32_1 = arith.constant 0 : i32
    return %c0_i32, %c0_i32_0 : i32, i32
  }
  func.func @transform_3(%arg0: i32) -> (i32, i32) {
    %c0_i32 = arith.constant 0 : i32
    %c0_i32_0 = arith.constant 0 : i32
    return %c0_i32, %arg0 : i32, i32
  }
}

</mosaic_0001>

<llo_original>
// kernel: tpu_custom_call.1
$region0: #{tpu_custom_call.1}
  #allocation0 [shape = 'u32[]', space=smem, size = 0x4, offset = 0x4, fixed_abs, tag = 'smem constant byte address 0x4 - core index']
  #allocation1 [shape = 'u32[144,128]{1,0:T(1,128)}', space=vmem, size = 0x12000, scoped, tag = 'internal scratch']
  %s0 = inlined_call_operand.hbm [shape: u8[6,4096], index: 0, kind: input, shape index: {}]
  %s1 = inlined_call_operand.vmem [shape: f32[6,1], index: 1, kind: input, shape index: {}]
  %s2 = inlined_call_operand.vmem [shape: f32[6,1], index: 2, kind: input, shape index: {}]
  %s3 = inlined_call_operand.hbm [shape: bf16[6,4096], index: 3, kind: output, shape index: {}]
  %s4 = sld [smem:[#allocation0]]
  $region26: #{tpu_custom_call.1} parent=0
    _
  %s6 = ssub.s32 1, %s4
  %s7 = scalar_select 0, %s6, %s4
  $region1: #{tpu_custom_call.1} parent=0
    #allocation2 [shape = 'u8[32768]{0}', space=vmem, size = 0x8000, scoped, tag = 'input window, operand 0, single buffered']
    #allocation3 [shape = 's32[1]{0}', space=sflag, size = 0x4, scoped, tag = 'scoped memory for tpu_custom_call.1']
    #allocation4 [shape = 's32[1]{0}', space=sflag, size = 0x4, scoped, tag = 'scoped memory for tpu_custom_call.1']
    #allocation5 [shape = 'u8[65536]{0}', space=vmem, size = 0x10000, scoped, tag = 'output window, operand 0, single buffered']
    %8 = vsyncpa [#allocation3], 0
    %9 = vsyncpa [#allocation4], 0
    // Predicated region
    $region2: #{tpu_custom_call.1} parent=1 // pred_check
      _
    $region3: #{tpu_custom_call.1} parent=1 // pred_check_branch
      %11 = sbr.rel (0) target = $region5
    $region4: #{tpu_custom_call.1} parent=1 // pred_region
      %s13 = ssub.s32 1024, 1024
      %14 = vsyncadd [#allocation3], %s13
      %s16 = sshll.u32 [#allocation2], 4
      %s17 = int_to_ptr.vmem [resolvable:$true] %s16
      %19 = dma.hbm_to_vmem [thread:$0]  %s0, 1024, %s17, [#allocation3]
    $region5: #{tpu_custom_call.1} parent=1 // pred_fallthru
      _
    // Predicated region
    $region6: #{tpu_custom_call.1} parent=1 // pred_check
      _
    $region7: #{tpu_custom_call.1} parent=1 // pred_check_branch
      %21 = sbr.rel (0) target = $region9
    $region8: #{tpu_custom_call.1} parent=1 // pred_region
      _
    $region9: #{tpu_custom_call.1} parent=1 // pred_fallthru
      _
    // Predicated region
    $region10: #{tpu_custom_call.1} parent=1 // pred_check
      _
    $region11: #{tpu_custom_call.1} parent=1 // pred_check_branch
      %23 = sbr.rel (0) target = $region13
    $region12: #{tpu_custom_call.1} parent=1 // pred_region
      _
    $region13: #{tpu_custom_call.1} parent=1 // pred_fallthru
      _
    // Predicated region
    $region14: #{tpu_custom_call.1} parent=1 // pred_check
      _
    $region15: #{tpu_custom_call.1} parent=1 // pred_check_branch
      %25 = sbr.rel (0) target = $region17
    $region16: #{tpu_custom_call.1} parent=1 // pred_region
      %26 = dma.done [#allocation3], 1024
    $region17: #{tpu_custom_call.1} parent=1 // pred_fallthru
      _
    %v27 = vld [vmem:[#allocation2] sm:$0xff]
    %v28 = vld [vmem:[#allocation2 + $0x8] sm:$0xff]
    %v29 = vld [vmem:[#allocation2 + $0x10] sm:$0xff]
    %v30 = vld [vmem:[#allocation2 + $0x18] sm:$0xff]
    %v31 = vld [vmem:[#allocation2 + $0x20] sm:$0xff]
    %v32 = vld [vmem:[#allocation2 + $0x28] sm:$0xff]
    %v33 = vld [vmem:[#allocation2 + $0x30] sm:$0xff]
    %v34 = vld [vmem:[#allocation2 + $0x38] sm:$0xff]
    %v35 = vunpack.c.0.s8 %v27
    %v36 = vunpack.c.1.s8 %v27
    %v37 = vunpack.c.2.s8 %v27
    %v38 = vunpack.c.3.s8 %v27
    %v39 = vunpack.c.0.s8 %v28
    %v40 = vunpack.c.1.s8 %v28
    %v41 = vunpack.c.2.s8 %v28
    %v42 = vunpack.c.3.s8 %v28
    %v43 = vunpack.c.0.s8 %v29
    %v44 = vunpack.c.1.s8 %v29
    %v45 = vunpack.c.2.s8 %v29
    %v46 = vunpack.c.3.s8 %v29
    %v47 = vunpack.c.0.s8 %v30
    %v48 = vunpack.c.1.s8 %v30
    %v49 = vunpack.c.2.s8 %v30
    %v50 = vunpack.c.3.s8 %v30
    %v51 = vunpack.c.0.s8 %v31
    %v52 = vunpack.c.1.s8 %v31
    %v53 = vunpack.c.2.s8 %v31
    %v54 = vunpack.c.3.s8 %v31
    %v55 = vunpack.c.0.s8 %v32
    %v56 = vunpack.c.1.s8 %v32
    %v57 = vunpack.c.2.s8 %v32
    %v58 = vunpack.c.3.s8 %v32
    %v59 = vunpack.c.0.s8 %v33
    %v60 = vunpack.c.1.s8 %v33
    %v61 = vunpack.c.2.s8 %v33
    %v62 = vunpack.c.3.s8 %v33
    %v63 = vunpack.c.0.s8 %v34
    %v64 = vunpack.c.1.s8 %v34
    %v65 = vunpack.c.2.s8 %v34
    %v66 = vunpack.c.3.s8 %v34
    %v67 = vand.u32 %v35, 255
    %v68 = vand.u32 %v36, 255
    %v69 = vand.u32 %v37, 255
    %v70 = vand.u32 %v38, 255
    %v71 = vand.u32 %v39, 255
    %v72 = vand.u32 %v40, 255
    %v73 = vand.u32 %v41, 255
    %v74 = vand.u32 %v42, 255
    %v75 = vand.u32 %v43, 255
    %v76 = vand.u32 %v44, 255
    %v77 = vand.u32 %v45, 255
    %v78 = vand.u32 %v46, 255
    %v79 = vand.u32 %v47, 255
    %v80 = vand.u32 %v48, 255
    %v81 = vand.u32 %v49, 255
    %v82 = vand.u32 %v50, 255
    %v83 = vand.u32 %v51, 255
    %v84 = vand.u32 %v52, 255
    %v85 = vand.u32 %v53, 255
    %v86 = vand.u32 %v54, 255
    %v87 = vand.u32 %v55, 255
    %v88 = vand.u32 %v56, 255
    %v89 = vand.u32 %v57, 255
    %v90 = vand.u32 %v58, 255
    %v91 = vand.u32 %v59, 255
    %v92 = vand.u32 %v60, 255
    %v93 = vand.u32 %v61, 255
    %v94 = vand.u32 %v62, 255
    %v95 = vand.u32 %v63, 255
    %v96 = vand.u32 %v64, 255
    %v97 = vand.u32 %v65, 255
    %v98 = vand.u32 %v66, 255
    %v99 = vcvt.s32.f32 %v67
    %v100 = vcvt.s32.f32 %v68
    %v101 = vcvt.s32.f32 %v69
    %v102 = vcvt.s32.f32 %v70
    %v103 = vcvt.s32.f32 %v71
    %v104 = vcvt.s32.f32 %v72
    %v105 = vcvt.s32.f32 %v73
    %v106 = vcvt.s32.f32 %v74
    %v107 = vcvt.s32.f32 %v75
    %v108 = vcvt.s32.f32 %v76
    %v109 = vcvt.s32.f32 %v77
    %v110 = vcvt.s32.f32 %v78
    %v111 = vcvt.s32.f32 %v79
    %v112 = vcvt.s32.f32 %v80
    %v113 = vcvt.s32.f32 %v81
    %v114 = vcvt.s32.f32 %v82
    %v115 = vcvt.s32.f32 %v83
    %v116 = vcvt.s32.f32 %v84
    %v117 = vcvt.s32.f32 %v85
    %v118 = vcvt.s32.f32 %v86
    %v119 = vcvt.s32.f32 %v87
    %v120 = vcvt.s32.f32 %v88
    %v121 = vcvt.s32.f32 %v89
    %v122 = vcvt.s32.f32 %v90
    %v123 = vcvt.s32.f32 %v91
    %v124 = vcvt.s32.f32 %v92
    %v125 = vcvt.s32.f32 %v93
    %v126 = vcvt.s32.f32 %v94
    %v127 = vcvt.s32.f32 %v95
    %v128 = vcvt.s32.f32 %v96
    %v129 = vcvt.s32.f32 %v97
    %v130 = vcvt.s32.f32 %v98
    %v131 = vld [vmem:[%s1] sm:$0x3f]
    %133 = vset.pattern.permute.xlu0 0
    %134 = vperm.xlu0 %133, %v131
    %v135 = vpop.permute.xlu0 %134
    %v137 = vmul.f32 %v99, %v135
    %v138 = vmul.f32 %v100, %v135
    %v139 = vmul.f32 %v101, %v135
    %v140 = vmul.f32 %v102, %v135
    %v141 = vmul.f32 %v103, %v135
    %v142 = vmul.f32 %v104, %v135
    %v143 = vmul.f32 %v105, %v135
    %v144 = vmul.f32 %v106, %v135
    %v145 = vmul.f32 %v107, %v135
    %v146 = vmul.f32 %v108, %v135
    %v147 = vmul.f32 %v109, %v135
    %v148 = vmul.f32 %v110, %v135
    %v149 = vmul.f32 %v111, %v135
    %v150 = vmul.f32 %v112, %v135
    %v151 = vmul.f32 %v113, %v135
    %v152 = vmul.f32 %v114, %v135
    %v153 = vmul.f32 %v115, %v135
    %v154 = vmul.f32 %v116, %v135
    %v155 = vmul.f32 %v117, %v135
    %v156 = vmul.f32 %v118, %v135
    %v157 = vmul.f32 %v119, %v135
    %v158 = vmul.f32 %v120, %v135
    %v159 = vmul.f32 %v121, %v135
    %v160 = vmul.f32 %v122, %v135
    %v161 = vmul.f32 %v123, %v135
    %v162 = vmul.f32 %v124, %v135
    %v163 = vmul.f32 %v125, %v135
    %v164 = vmul.f32 %v126, %v135
    %v165 = vmul.f32 %v127, %v135
    %v166 = vmul.f32 %v128, %v135
    %v167 = vmul.f32 %v129, %v135
    %v168 = vmul.f32 %v130, %v135
    %v169 = vld [vmem:[%s2] sm:$0x3f]
    %171 = vset.pattern.permute.xlu0 0
    %172 = vperm.xlu0 %171, %v169
    %v173 = vpop.permute.xlu0 %172
    %v175 = vadd.f32 %v137, %v173
    %v176 = vadd.f32 %v138, %v173
    %v177 = vadd.f32 %v139, %v173
    %v178 = vadd.f32 %v140, %v173
    %v179 = vadd.f32 %v141, %v173
    %v180 = vadd.f32 %v142, %v173
    %v181 = vadd.f32 %v143, %v173
    %v182 = vadd.f32 %v144, %v173
    %v183 = vadd.f32 %v145, %v173
    %v184 = vadd.f32 %v146, %v173
    %v185 = vadd.f32 %v147, %v173
    %v186 = vadd.f32 %v148, %v173
    %v187 = vadd.f32 %v149, %v173
    %v188 = vadd.f32 %v150, %v173
    %v189 = vadd.f32 %v151, %v173
    %v190 = vadd.f32 %v152, %v173
    %v191 = vadd.f32 %v153, %v173
    %v192 = vadd.f32 %v154, %v173
    %v193 = vadd.f32 %v155, %v173
    %v194 = vadd.f32 %v156, %v173
    %v195 = vadd.f32 %v157, %v173
    %v196 = vadd.f32 %v158, %v173
    %v197 = vadd.f32 %v159, %v173
    %v198 = vadd.f32 %v160, %v173
    %v199 = vadd.f32 %v161, %v173
    %v200 = vadd.f32 %v162, %v173
    %v201 = vadd.f32 %v163, %v173
    %v202 = vadd.f32 %v164, %v173
    %v203 = vadd.f32 %v165, %v173
    %v204 = vadd.f32 %v166, %v173
    %v205 = vadd.f32 %v167, %v173
    %v206 = vadd.f32 %v168, %v173
    %v207 = vpack.c.bf16 %v175, %v175
    %v208 = vpack.c.bf16 %v176, %v176
    %v209 = vpack.c.bf16 %v177, %v177
    %v210 = vpack.c.bf16 %v178, %v178
    %v211 = vpack.c.bf16 %v179, %v179
    %v212 = vpack.c.bf16 %v180, %v180
    %v213 = vpack.c.bf16 %v181, %v181
    %v214 = vpack.c.bf16 %v182, %v182
    %v215 = vpack.c.bf16 %v183, %v183
    %v216 = vpack.c.bf16 %v184, %v184
    %v217 = vpack.c.bf16 %v185, %v185
    %v218 = vpack.c.bf16 %v186, %v186
    %v219 = vpack.c.bf16 %v187, %v187
    %v220 = vpack.c.bf16 %v188, %v188
    %v221 = vpack.c.bf16 %v189, %v189
    %v222 = vpack.c.bf16 %v190, %v190
    %v223 = vpack.c.bf16 %v191, %v191
    %v224 = vpack.c.bf16 %v192, %v192
    %v225 = vpack.c.bf16 %v193, %v193
    %v226 = vpack.c.bf16 %v194, %v194
    %v227 = vpack.c.bf16 %v195, %v195
    %v228 = vpack.c.bf16 %v196, %v196
    %v229 = vpack.c.bf16 %v197, %v197
    %v230 = vpack.c.bf16 %v198, %v198
    %v231 = vpack.c.bf16 %v199, %v199
    %v232 = vpack.c.bf16 %v200, %v200
    %v233 = vpack.c.bf16 %v201, %v201
    %v234 = vpack.c.bf16 %v202, %v202
    %v235 = vpack.c.bf16 %v203, %v203
    %v236 = vpack.c.bf16 %v204, %v204
    %v237 = vpack.c.bf16 %v205, %v205
    %v238 = vpack.c.bf16 %v206, %v206
    %v271 = vunpack.c.l.b16 %v207
    %v272 = vunpack.c.l.b16 %v208
    %v273 = vunpack.c.l.b16 %v209
    %v274 = vunpack.c.l.b16 %v210
    %v275 = vunpack.c.l.b16 %v211
    %v276 = vunpack.c.l.b16 %v212
    %v277 = vunpack.c.l.b16 %v213
    %v278 = vunpack.c.l.b16 %v214
    %v279 = vunpack.c.l.b16 %v215
    %v280 = vunpack.c.l.b16 %v216
    %v281 = vunpack.c.l.b16 %v217
    %v282 = vunpack.c.l.b16 %v218
    %v283 = vunpack.c.l.b16 %v219
    %v284 = vunpack.c.l.b16 %v220
    %v285 = vunpack.c.l.b16 %v221
    %v286 = vunpack.c.l.b16 %v222
    %v287 = vunpack.c.l.b16 %v223
    %v288 = vunpack.c.l.b16 %v224
    %v289 = vunpack.c.l.b16 %v225
    %v290 = vunpack.c.l.b16 %v226
    %v291 = vunpack.c.l.b16 %v227
    %v292 = vunpack.c.l.b16 %v228
    %v293 = vunpack.c.l.b16 %v229
    %v294 = vunpack.c.l.b16 %v230
    %v295 = vunpack.c.l.b16 %v231
    %v296 = vunpack.c.l.b16 %v232
    %v297 = vunpack.c.l.b16 %v233
    %v298 = vunpack.c.l.b16 %v234
    %v299 = vunpack.c.l.b16 %v235
    %v300 = vunpack.c.l.b16 %v236
    %v301 = vunpack.c.l.b16 %v237
    %v302 = vunpack.c.l.b16 %v238
    %v303 = vpack.c.b16 %v272, %v271
    %v304 = vpack.c.b16 %v274, %v273
    %v305 = vpack.c.b16 %v276, %v275
    %v306 = vpack.c.b16 %v278, %v277
    %v307 = vpack.c.b16 %v280, %v279
    %v308 = vpack.c.b16 %v282, %v281
    %v309 = vpack.c.b16 %v284, %v283
    %v310 = vpack.c.b16 %v286, %v285
    %v311 = vpack.c.b16 %v288, %v287
    %v312 = vpack.c.b16 %v290, %v289
    %v313 = vpack.c.b16 %v292, %v291
    %v314 = vpack.c.b16 %v294, %v293
    %v315 = vpack.c.b16 %v296, %v295
    %v316 = vpack.c.b16 %v298, %v297
    %v317 = vpack.c.b16 %v300, %v299
    %v318 = vpack.c.b16 %v302, %v301
    %335 = vst [vmem:[#allocation5] sm:$0x77] %v303
    %336 = vst [vmem:[#allocation5 + $0x8] sm:$0x77] %v304
    %337 = vst [vmem:[#allocation5 + $0x10] sm:$0x77] %v305
    %338 = vst [vmem:[#allocation5 + $0x18] sm:$0x77] %v306
    %339 = vst [vmem:[#allocation5 + $0x20] sm:$0x77] %v307
    %340 = vst [vmem:[#allocation5 + $0x28] sm:$0x77] %v308
    %341 = vst [vmem:[#allocation5 + $0x30] sm:$0x77] %v309
    %342 = vst [vmem:[#allocation5 + $0x38] sm:$0x77] %v310
    %343 = vst [vmem:[#allocation5 + $0x40] sm:$0x77] %v311
    %344 = vst [vmem:[#allocation5 + $0x48] sm:$0x77] %v312
    %345 = vst [vmem:[#allocation5 + $0x50] sm:$0x77] %v313
    %346 = vst [vmem:[#allocation5 + $0x58] sm:$0x77] %v314
    %347 = vst [vmem:[#allocation5 + $0x60] sm:$0x77] %v315
    %348 = vst [vmem:[#allocation5 + $0x68] sm:$0x77] %v316
    %349 = vst [vmem:[#allocation5 + $0x70] sm:$0x77] %v317
    %350 = vst [vmem:[#allocation5 + $0x78] sm:$0x77] %v318
    // Predicated region
    $region18: #{tpu_custom_call.1} parent=1 // pred_check
      _
    $region19: #{tpu_custom_call.1} parent=1 // pred_check_branch
      %352 = sbr.rel (0) target = $region21
    $region20: #{tpu_custom_call.1} parent=1 // pred_region
      %s354 = ssub.s32 2048, 2048
      %355 = vsyncadd [#allocation4], %s354
      %s357 = sshll.u32 [#allocation5], 4
      %s358 = int_to_ptr.vmem [resolvable:$true] %s357
      %360 = dma.vmem_to_hbm [thread:$0]  %s358, 2048, %s3, [#allocation4]
    $region21: #{tpu_custom_call.1} parent=1 // pred_fallthru
      _
    // Predicated region
    $region22: #{tpu_custom_call.1} parent=1 // pred_check
      _
    $region23: #{tpu_custom_call.1} parent=1 // pred_check_branch
      %362 = sbr.rel (0) target = $region25
    $region24: #{tpu_custom_call.1} parent=1 // pred_region
      %363 = dma.done [#allocation4], 2048
    $region25: #{tpu_custom_call.1} parent=1 // pred_fallthru
      _
    %364 = vsyncpa [#allocation3], 1
    %365 = vsyncpa [#allocation4], 1

</llo_original>
